<compile_context>
chip_gen: v7x
topology: tpu7x:2x2x1
jax: 0.10.0
libtpu: 0.0.40
codegen_flags: <defaults>
</compile_context>

<pallas_src>
import functools

import jax
import jax.numpy as jnp
from jax.experimental import pallas as pl
from jax.experimental.pallas import tpu as pltpu


def _wrl_kernel(p_ref, t_ref, o_ref, *, mse_w, mae_w, n_rows, r_tile,
                tiles_per_core, needs_mask):
    """Accumulate per-lane sums of |d|*(mse_w*|d|+mae_w) into the resident
    (1, 8, 128) output block of this core."""
    i = pl.program_id(1)

    @pl.when(i == 0)
    def _init():
        o_ref[...] = jnp.zeros_like(o_ref)

    # Cast AFTER the (possibly bf16) DMA; all arithmetic in f32.
    p = p_ref[...].astype(jnp.float32)
    t = t_ref[...].astype(jnp.float32)

    def accumulate(d):
        a = jnp.abs(d)
        # mse_w*d^2 + mae_w*|d| == |d| * (mse_w*|d| + mae_w)
        contrib = a * (jnp.float32(mse_w) * a + jnp.float32(mae_w))
        if r_tile % 8 == 0:
            # Free vreg reinterpretation + pure-VALU partial reduction.
            red = contrib.reshape(r_tile // 8, 8, 128).sum(axis=0)
            o_ref[...] += red[None]
        else:
            # Only reachable for a single small full-array tile (grid (1,1)).
            o_ref[0, 0:1, :] += jnp.sum(contrib, axis=0, keepdims=True)

    if needs_mask:
        tile_idx = pl.program_id(0) * tiles_per_core + i
        is_full = (tile_idx + 1) * r_tile <= n_rows

        @pl.when(is_full)
        def _full_tile():
            accumulate(p - t)

        @pl.when(jnp.logical_not(is_full))
        def _edge_tile():
            rows = tile_idx * r_tile + jax.lax.broadcasted_iota(
                jnp.int32, (r_tile, 128), 0)
            accumulate(jnp.where(rows < n_rows, p - t, jnp.float32(0.0)))
    else:
        accumulate(p - t)


def weighted_regression_loss(preds, targets, *, mean_weight=0.7, std_weight=0.3,
                             mse_weight=0.5, mae_weight=0.5, tile_rows=8192):
    """JAX/Pallas equivalent of WeightedRegressionLoss.forward.

    preds, targets: (B, 2) arrays (col 0 = mean, col 1 = std), any float dtype.
    """
    assert preds.shape == targets.shape
    assert preds.ndim == 2 and preds.shape[1] == 2, "expected (B, 2) inputs"
    b = preds.shape[0]
    total = 2 * b
    n_rows = total // 128          # full 128-lane rows (each row = 64 batch items)
    n_main = n_rows * 128

    mse_w, mae_w = float(mse_weight), float(mae_weight)
    mean_w, std_w = float(mean_weight), float(std_weight)

    main_sum = jnp.float32(0.0)
    if n_rows > 0:
        if n_main == total:                      # B % 64 == 0: zero-copy reshape
            p_main = preds.reshape(n_rows, 128)
            t_main = targets.reshape(n_rows, 128)
        else:                                    # contiguous 128-aligned prefix
            p_main = preds.reshape(-1)[:n_main].reshape(n_rows, 128)
            t_main = targets.reshape(-1)[:n_main].reshape(n_rows, 128)

        tile_rows = max(8, (int(tile_rows) // 8) * 8)
        r_tile = n_rows if n_rows <= tile_rows else tile_rows
        total_tiles = -(-n_rows // r_tile)
        num_splits = 2 if total_tiles >= 2 else 1      # one per v7x TensorCore
        tiles_per_core = -(-total_tiles // num_splits)
        needs_clamp = num_splits * tiles_per_core != total_tiles
        needs_mask = needs_clamp or (n_rows % r_tile != 0)

        if needs_clamp:
            def in_map(c, i, _t=tiles_per_core, _last=total_tiles - 1):
                return (jnp.minimum(c * _t + i, _last), 0)
        else:
            def in_map(c, i, _t=tiles_per_core):
                return (c * _t + i, 0)

        kernel = functools.partial(
            _wrl_kernel, mse_w=mse_w, mae_w=mae_w, n_rows=n_rows, r_tile=r_tile,
            tiles_per_core=tiles_per_core, needs_mask=needs_mask)

        out = pl.pallas_call(
            kernel,
            out_shape=jax.ShapeDtypeStruct((num_splits, 8, 128), jnp.float32),
            grid_spec=pltpu.PrefetchScalarGridSpec(
                num_scalar_prefetch=0,
                grid=(num_splits, tiles_per_core),
                in_specs=[pl.BlockSpec((r_tile, 128), in_map),
                          pl.BlockSpec((r_tile, 128), in_map)],
                out_specs=pl.BlockSpec((1, 8, 128), lambda c, i: (c, 0, 0)),
            ),
            compiler_params=pltpu.CompilerParams(
                dimension_semantics=("parallel", "arbitrary"),
                vmem_limit_bytes=48 * 1024 * 1024,
            ),
        )(p_main, t_main)

        # Per-lane row weights: even lanes = mean column, odd lanes = std column.
        w_lane = jnp.where(jnp.arange(128) % 2 == 0, mean_w, std_w).astype(jnp.float32)
        main_sum = jnp.sum(out * w_lane)

    tail_sum = jnp.float32(0.0)
    n_tail = total - n_main
    if n_tail > 0:     # B % 64 != 0: < 128 leftover elements, pure JAX
        p_tail = preds.reshape(-1)[n_main:].astype(jnp.float32)
        t_tail = targets.reshape(-1)[n_main:].astype(jnp.float32)
        d = p_tail - t_tail
        a = jnp.abs(d)
        f = a * (mse_w * a + mae_w)
        w = jnp.where(jnp.arange(n_tail) % 2 == 0, mean_w, std_w).astype(jnp.float32)
        tail_sum = jnp.sum(w * f)

    return (main_sum + tail_sum) / jnp.float32(b)


def _reference_loss(preds, targets, mean_weight=0.7, std_weight=0.3,
                    mse_weight=0.5, mae_weight=0.5):
    preds = preds.astype(jnp.float32)
    targets = targets.astype(jnp.float32)
    d_mean = preds[:, 0] - targets[:, 0]
    d_std = preds[:, 1] - targets[:, 1]
    mean_loss = mse_weight * jnp.mean(d_mean ** 2) + mae_weight * jnp.mean(jnp.abs(d_mean))
    std_loss = mse_weight * jnp.mean(d_std ** 2) + mae_weight * jnp.mean(jnp.abs(d_std))
    return mean_weight * mean_loss + std_weight * std_loss


if __name__ == "__main__":
    key = jax.random.PRNGKey(0)
    k1, k2, k3, k4 = jax.random.split(key, 4)

    # Case 1: B % 64 == 0 -> fully zero-copy, single full-array tile.
    B1 = 832
    p1 = jax.random.normal(k1, (B1, 2), dtype=jnp.float32)
    t1 = jax.random.normal(k2, (B1, 2), dtype=jnp.float32)
    l1 = jax.block_until_ready(weighted_regression_loss(p1, t1))
    r1 = _reference_loss(p1, t1)
    assert jnp.allclose(l1, r1, rtol=1e-5, atol=1e-5), (l1, r1)

    # Case 2: tiny tiles -> multi-tile grid, 2-way core split, masked ragged tile.
    l1b = jax.block_until_ready(weighted_regression_loss(p1, t1, tile_rows=8))
    assert jnp.allclose(l1b, r1, rtol=1e-5, atol=1e-5), (l1b, r1)

    # Case 3: B % 64 != 0 -> kernel on the 128-aligned prefix + pure-JAX tail.
    B2 = 300
    p2 = jax.random.normal(k3, (B2, 2), dtype=jnp.float32)
    t2 = jax.random.normal(k4, (B2, 2), dtype=jnp.float32)
    l2 = jax.block_until_ready(weighted_regression_loss(p2, t2))
    r2 = _reference_loss(p2, t2)
    assert jnp.allclose(l2, r2, rtol=1e-5, atol=1e-5), (l2, r2)

    # Case 4: bf16 inputs stream at native width; math is f32 after the load.
    l3 = jax.block_until_ready(
        weighted_regression_loss(p1.astype(jnp.bfloat16), t1.astype(jnp.bfloat16)))
    r3 = _reference_loss(p1.astype(jnp.bfloat16), t1.astype(jnp.bfloat16))
    assert jnp.allclose(l3, r3, rtol=1e-4, atol=1e-4), (l3, r3)

    print("KERNEL_OK")
</pallas_src>

<mosaic_0001>
module attributes {stable_mosaic.version = 11 : i64} {
  func.func @_wrl_kernel(%arg0: i32, %arg1: i32, %arg2: memref<13x128xf32, #tpu.memory_space<vmem>>, %arg3: memref<13x128xf32, #tpu.memory_space<vmem>>, %arg4: memref<1x8x128xf32, #tpu.memory_space<vmem>>) attributes {dimension_semantics = [#tpu.dimension_semantics<parallel>, #tpu.dimension_semantics<arbitrary>], iteration_bounds = array<i64: 1, 1>, scalar_prefetch = 0 : i64, scratch_operands = 0 : i64, tpu.core_type = #tpu.core_type<tc>, window_params = [{transform_indices = @transform_0, window_bounds = array<i64: 13, 128>}, {transform_indices = @transform_1, window_bounds = array<i64: 13, 128>}, {transform_indices = @transform_2, window_bounds = array<i64: 1, 8, 128>}]} {
    %c0_i32 = arith.constant 0 : i32
    %0 = arith.cmpi eq, %arg1, %c0_i32 : i32
    %1 = arith.extui %0 : i1 to i32
    %c0_i32_0 = arith.constant 0 : i32
    %2 = arith.cmpi ne, %1, %c0_i32_0 : i32
    scf.if %2 {
      %cst_12 = arith.constant 0.000000e+00 : f32
      %20 = vector.broadcast %cst_12 : f32 to vector<1x8x128xf32>
      %c0_13 = arith.constant 0 : index
      %c0_14 = arith.constant 0 : index
      %c0_15 = arith.constant 0 : index
      %21 = vector.load %arg4[%c0_13, %c0_14, %c0_15] : memref<1x8x128xf32, #tpu.memory_space<vmem>>, vector<1x8x128xf32>
      tpu.vector_store %arg4[%c0_13, %c0_14, %c0_15], %20 {strides = array<i32>} : memref<1x8x128xf32, #tpu.memory_space<vmem>>, vector<1x8x128xf32>,
    } else {
    }
    %c0 = arith.constant 0 : index
    %c0_1 = arith.constant 0 : index
    %3 = vector.load %arg2[%c0, %c0_1] : memref<13x128xf32, #tpu.memory_space<vmem>>, vector<13x128xf32>
    %c0_2 = arith.constant 0 : index
    %c0_3 = arith.constant 0 : index
    %4 = vector.load %arg3[%c0_2, %c0_3] : memref<13x128xf32, #tpu.memory_space<vmem>>, vector<13x128xf32>
    %5 = arith.subf %3, %4 : vector<13x128xf32>
    %6 = math.absf %5 : vector<13x128xf32>
    %cst = arith.constant 5.000000e-01 : f32
    %7 = vector.broadcast %cst : f32 to vector<13x128xf32>
    %8 = arith.mulf %7, %6 : vector<13x128xf32>
    %cst_4 = arith.constant 5.000000e-01 : f32
    %9 = vector.broadcast %cst_4 : f32 to vector<13x128xf32>
    %10 = arith.addf %8, %9 : vector<13x128xf32>
    %11 = arith.mulf %6, %10 : vector<13x128xf32>
    %c0_5 = arith.constant 0 : index
    %c0_6 = arith.constant 0 : index
    %c0_7 = arith.constant 0 : index
    %12 = vector.load %arg4[%c0_5, %c0_6, %c0_7] : memref<1x8x128xf32, #tpu.memory_space<vmem>>, vector<1x1x128xf32>
    %13 = vector.shape_cast %12 : vector<1x1x128xf32> to vector<1x128xf32>
    %cst_8 = arith.constant dense<0.000000e+00> : vector<128xf32>
    %14 = vector.multi_reduction <add>, %11, %cst_8 [0] : vector<13x128xf32> to vector<128xf32>
    %15 = vector.shape_cast %14 : vector<128xf32> to vector<1x128xf32>
    %16 = arith.addf %13, %15 : vector<1x128xf32>
    %c0_9 = arith.constant 0 : index
    %c0_10 = arith.constant 0 : index
    %c0_11 = arith.constant 0 : index
    %17 = vector.load %arg4[%c0_9, %c0_10, %c0_11] : memref<1x8x128xf32, #tpu.memory_space<vmem>>, vector<1x1x128xf32>
    %18 = vector.shape_cast %17 : vector<1x1x128xf32> to vector<1x128xf32>
    %19 = vector.shape_cast %16 : vector<1x128xf32> to vector<1x1x128xf32>
    tpu.vector_store %arg4[%c0_9, %c0_10, %c0_11], %19 {strides = array<i32>} : memref<1x8x128xf32, #tpu.memory_space<vmem>>, vector<1x1x128xf32>,
    return
  }
  func.func @transform_0(%arg0: i32, %arg1: i32) -> (i32, i32) {
    %c1_i32 = arith.constant 1 : i32
    %0 = arith.muli %arg0, %c1_i32 : i32
    %1 = arith.addi %0, %arg1 : i32
    %c0_i32 = arith.constant 0 : i32
    %c0_i32_0 = arith.constant 0 : i32
    return %1, %c0_i32 : i32, i32
  }
  func.func @transform_1(%arg0: i32, %arg1: i32) -> (i32, i32) {
    %c1_i32 = arith.constant 1 : i32
    %0 = arith.muli %arg0, %c1_i32 : i32
    %1 = arith.addi %0, %arg1 : i32
    %c0_i32 = arith.constant 0 : i32
    %c0_i32_0 = arith.constant 0 : i32
    return %1, %c0_i32 : i32, i32
  }
  func.func @transform_2(%arg0: i32, %arg1: i32) -> (i32, i32, i32) {
    %c0_i32 = arith.constant 0 : i32
    %c0_i32_0 = arith.constant 0 : i32
    %c0_i32_1 = arith.constant 0 : i32
    return %arg0, %c0_i32, %c0_i32_0 : i32, i32, i32
  }
}

</mosaic_0001>

<llo_original>
// kernel: tpu_custom_call.1
$region0: #{tpu_custom_call.1}
  #allocation0 [shape = 'u32[]', space=smem, size = 0x4, offset = 0x4, fixed_abs, tag = 'smem constant byte address 0x4 - core index']
  #allocation1 [shape = 'u32[144,128]{1,0:T(1,128)}', space=vmem, size = 0x12000, scoped, tag = 'internal scratch']
  %s0 = inlined_call_operand.hbm [shape: f32[13,128], index: 0, kind: input, shape index: {}]
  %s1 = inlined_call_operand.hbm [shape: f32[13,128], index: 1, kind: input, shape index: {}]
  %s2 = inlined_call_operand.hbm [shape: f32[1,8,128], index: 2, kind: output, shape index: {}]
  %s3 = sld [smem:[#allocation0]]
  $region30: #{tpu_custom_call.1} parent=0
    _
  %s5 = ssub.s32 1, %s3
  %s6 = scalar_select 0, %s5, %s3
  $region1: #{tpu_custom_call.1} parent=0
    #allocation2 [shape = 'u8[8192]{0}', space=vmem, size = 0x2000, scoped, tag = 'input window, operand 0, single buffered']
    #allocation3 [shape = 's32[1]{0}', space=sflag, size = 0x4, scoped, tag = 'scoped memory for tpu_custom_call.1']
    #allocation4 [shape = 's32[1]{0}', space=sflag, size = 0x4, scoped, tag = 'scoped memory for tpu_custom_call.1']
    #allocation5 [shape = 'u8[8192]{0}', space=vmem, size = 0x2000, scoped, tag = 'input window, operand 1, single buffered']
    #allocation6 [shape = 's32[1]{0}', space=sflag, size = 0x4, scoped, tag = 'scoped memory for tpu_custom_call.1']
    #allocation7 [shape = 'u8[4096]{0}', space=vmem, size = 0x1000, scoped, tag = 'output window, operand 0, single buffered']
    %7 = vsyncpa [#allocation3], 0
    %8 = vsyncpa [#allocation6], 0
    %9 = vsyncpa [#allocation4], 0
    // Predicated region
    $region2: #{tpu_custom_call.1} parent=1 // pred_check
      _
    $region3: #{tpu_custom_call.1} parent=1 // pred_check_branch
      %11 = sbr.rel (0) target = $region5
    $region4: #{tpu_custom_call.1} parent=1 // pred_region
      %s12 = sadd.s32 0, 0
      %s13 = smul.u32 2, %s12
      %s15 = ssub.s32 256, 256
      %16 = vsyncadd [#allocation3], %s15
      %s17 = smul.addr %s13, 128
      %s18 = scalar_lea.hbm %s0, %s17
      %s19 = sshll.u32 [#allocation2], 4
      %s20 = int_to_ptr.vmem [resolvable:$true] %s19
      %25 = dma.hbm_to_vmem [thread:$0]  %s18, 256, %s20, [#allocation3], 128, 128, 8
    $region5: #{tpu_custom_call.1} parent=1 // pred_fallthru
      _
    // Predicated region
    $region6: #{tpu_custom_call.1} parent=1 // pred_check
      _
    $region7: #{tpu_custom_call.1} parent=1 // pred_check_branch
      %27 = sbr.rel (0) target = $region9
    $region8: #{tpu_custom_call.1} parent=1 // pred_region
      %s28 = sadd.s32 0, 0
      %s29 = smul.u32 2, %s28
      %s31 = ssub.s32 256, 256
      %32 = vsyncadd [#allocation6], %s31
      %s33 = smul.addr %s29, 128
      %s34 = scalar_lea.hbm %s1, %s33
      %s35 = sshll.u32 [#allocation5], 4
      %s36 = int_to_ptr.vmem [resolvable:$true] %s35
      %41 = dma.hbm_to_vmem [thread:$0]  %s34, 256, %s36, [#allocation6], 128, 128, 8
    $region9: #{tpu_custom_call.1} parent=1 // pred_fallthru
      _
    // Predicated region
    $region10: #{tpu_custom_call.1} parent=1 // pred_check
      _
    $region11: #{tpu_custom_call.1} parent=1 // pred_check_branch
      %43 = sbr.rel (0) target = $region13
    $region12: #{tpu_custom_call.1} parent=1 // pred_region
      %44 = dma.done [#allocation3], 256
    $region13: #{tpu_custom_call.1} parent=1 // pred_fallthru
      _
    // Predicated region
    $region14: #{tpu_custom_call.1} parent=1 // pred_check
      _
    $region15: #{tpu_custom_call.1} parent=1 // pred_check_branch
      %46 = sbr.rel (0) target = $region17
    $region16: #{tpu_custom_call.1} parent=1 // pred_region
      %47 = dma.done [#allocation6], 256
    $region17: #{tpu_custom_call.1} parent=1 // pred_fallthru
      _
    %s48 = sadd.s32 0, 0
    %s49 = smul.u32 2, %s48
    %s50 = sadd.s32 0, 0
    %s51 = smul.u32 2, %s50
    %p52 = scmp.eq.s32.totalorder 0, 0
    // Predicated region
    $region18: #{tpu_custom_call.1} parent=1 // pred_check
      %p53 = pneg %p52
    $region19: #{tpu_custom_call.1} parent=1 // pred_check_branch
      %55 = sbr.rel (%p53) target = $region21
    $region20: #{tpu_custom_call.1} parent=1 // pred_region
      %56 = vst [vmem:[#allocation7] sm:$0xff] 0.0
    $region21: #{tpu_custom_call.1} parent=1 // pred_fallthru
      _
    %v57 = vld [vmem:[#allocation2] sm:$0xff]
    %v58 = vld [vmem:[#allocation2 + $0x8] sm:$0x1f]
    %v59 = vld [vmem:[#allocation5] sm:$0xff]
    %v60 = vld [vmem:[#allocation5 + $0x8] sm:$0x1f]
    %v61 = vsub.f32 %v57, %v59
    %v62 = vsub.f32 %v58, %v60
    %v63 = vand.u32 2147483647, %v61
    %v64 = vand.u32 2147483647, %v62
    %v65 = vmul.f32 %v63, 0.5
    %v66 = vmul.f32 %v64, 0.5
    %v67 = vadd.f32 %v65, 0.5
    %v68 = vadd.f32 %v66, 0.5
    %v69 = vmul.f32 %v63, %v67
    %v70 = vmul.f32 %v64, %v68
    %v71 = vld [vmem:[#allocation7] sm:$0x1]
    %vm72 = vcmask 1044480
    %v73 = vsel %vm72, %v70, 0.0
    %v74 = vadd.f32 %v69, %v73
    %v75 = vrot.slane %v74, 4
    %v76 = vadd.f32 %v74, %v75
    %v77 = vrot.slane %v76, 2
    %v78 = vadd.f32 %v76, %v77
    %v79 = vrot.slane %v78, 1
    %v80 = vadd.f32 %v78, %v79
    %v81 = vadd.f32 %v71, %v80
    %82 = vst [vmem:[#allocation7] sm:$0x1] %v81
    // Predicated region
    $region22: #{tpu_custom_call.1} parent=1 // pred_check
      _
    $region23: #{tpu_custom_call.1} parent=1 // pred_check_branch
      %84 = sbr.rel (0) target = $region25
    $region24: #{tpu_custom_call.1} parent=1 // pred_region
      %s86 = ssub.s32 128, 128
      %87 = vsyncadd [#allocation4], %s86
      %s89 = sshll.u32 [#allocation7], 4
      %s90 = int_to_ptr.vmem [resolvable:$true] %s89
      %92 = dma.vmem_to_hbm [thread:$0]  %s90, 128, %s2, [#allocation4]
    $region25: #{tpu_custom_call.1} parent=1 // pred_fallthru
      _
    // Predicated region
    $region26: #{tpu_custom_call.1} parent=1 // pred_check
      _
    $region27: #{tpu_custom_call.1} parent=1 // pred_check_branch
      %94 = sbr.rel (0) target = $region29
    $region28: #{tpu_custom_call.1} parent=1 // pred_region
      %95 = dma.done [#allocation4], 128
    $region29: #{tpu_custom_call.1} parent=1 // pred_fallthru
      _
    %96 = vsyncpa [#allocation3], 1
    %97 = vsyncpa [#allocation6], 1
    %98 = vsyncpa [#allocation4], 1

</llo_original>
